<compile_context>
chip_gen: v7x
topology: tpu7x:2x2x1
jax: 0.10.0
libtpu: 0.0.40
codegen_flags: <defaults>
</compile_context>

<pallas_src>
import functools
import numpy as np
import jax
import jax.numpy as jnp
from jax import lax
from jax.experimental import pallas as pl
from jax.experimental.pallas import tpu as pltpu

ATROUS_RATES = (6, 12, 18)
CLASSES = 2
ZOOM_FACTOR = 8
BN_EPS = 1e-5


def _round_up(x, m):
    return (x + m - 1) // m * m


def _pick_tile(size, candidates):
    for c in candidates:
        if size % c == 0:
            return c
    return 128


# ----------------------------- Pallas kernels ------------------------------

def _mm_affine_kernel(x_ref, w_ref, s_ref, b_ref, o_ref, *, relu):
    """One (tm, tn) output tile; accumulates over the K grid axis into o_ref."""
    k = pl.program_id(2)

    @pl.when(k == 0)
    def _():
        o_ref[...] = jnp.zeros_like(o_ref)

    o_ref[...] += jnp.dot(x_ref[...], w_ref[...],
                          preferred_element_type=jnp.float32)

    @pl.when(k == pl.num_programs(2) - 1)
    def _():
        y = o_ref[...] * s_ref[...] + b_ref[...]
        if relu:
            y = jnp.maximum(y, 0.0)
        o_ref[...] = y


def _mm_affine_res_kernel(x_ref, w_ref, s_ref, b_ref, r_ref, o_ref, *, relu):
    """Same as above, plus a fused residual add before the optional ReLU."""
    k = pl.program_id(2)

    @pl.when(k == 0)
    def _():
        o_ref[...] = jnp.zeros_like(o_ref)

    o_ref[...] += jnp.dot(x_ref[...], w_ref[...],
                          preferred_element_type=jnp.float32)

    @pl.when(k == pl.num_programs(2) - 1)
    def _():
        y = o_ref[...] * s_ref[...] + b_ref[...] + r_ref[...]
        if relu:
            y = jnp.maximum(y, 0.0)
        o_ref[...] = y


@functools.partial(jax.jit, static_argnames=("relu",))
def matmul_affine(x, w, scale, bias, residual=None, *, relu=False):
    """relu_opt((x @ w) * scale + bias [+ residual]); x:[M,K], w:[K,N]."""
    M, K = x.shape
    _, N = w.shape

    # bf16 MXU inputs, f32 accumulation in the kernel.
    x = x.astype(jnp.bfloat16)
    w = w.astype(jnp.bfloat16)

    Kp = _round_up(max(K, 128), 128)
    Np = _round_up(max(N, 128), 128)
    if M >= 2048:
        tm = 512
    elif M > 256:
        tm = 256
    else:
        tm = _round_up(max(M, 16), 16)
    Mp = _round_up(M, tm)
    tk = _pick_tile(Kp, (512, 256, 128))
    tn = _pick_tile(Np, (512, 256, 128))

    if (Mp, Kp) != (M, K):
        x = jnp.pad(x, ((0, Mp - M), (0, Kp - K)))
    if (Kp, Np) != (K, N):
        w = jnp.pad(w, ((0, Kp - K), (0, Np - N)))
    s = jnp.pad(scale.astype(jnp.float32).reshape(1, N), ((0, 0), (0, Np - N)))
    b = jnp.pad(bias.astype(jnp.float32).reshape(1, N), ((0, 0), (0, Np - N)))

    in_specs = [
        pl.BlockSpec((tm, tk), lambda i, j, k: (i, k)),
        pl.BlockSpec((tk, tn), lambda i, j, k: (k, j)),
        pl.BlockSpec((1, tn), lambda i, j, k: (0, j)),
        pl.BlockSpec((1, tn), lambda i, j, k: (0, j)),
    ]
    args = [x, w, s, b]
    if residual is not None:
        r = residual.astype(jnp.float32)
        if (Mp, Np) != (M, N):
            r = jnp.pad(r, ((0, Mp - M), (0, Np - N)))
        in_specs.append(pl.BlockSpec((tm, tn), lambda i, j, k: (i, j)))
        args.append(r)
        kernel = functools.partial(_mm_affine_res_kernel, relu=relu)
    else:
        kernel = functools.partial(_mm_affine_kernel, relu=relu)

    out = pl.pallas_call(
        kernel,
        out_shape=jax.ShapeDtypeStruct((Mp, Np), jnp.float32),
        grid_spec=pltpu.PrefetchScalarGridSpec(
            num_scalar_prefetch=0,
            grid=(Mp // tm, Np // tn, Kp // tk),
            in_specs=in_specs,
            out_specs=pl.BlockSpec((tm, tn), lambda i, j, k: (i, j)),
        ),
        compiler_params=pltpu.CompilerParams(
            dimension_semantics=("parallel", "parallel", "arbitrary"),
            vmem_limit_bytes=32 * 1024 * 1024),
    )(*args)
    if (Mp, Np) != (M, N):
        out = out[:M, :N]
    return out


def _gap_kernel(x_ref, o_ref, *, inv_hw):
    s = pl.program_id(1)

    @pl.when(s == 0)
    def _():
        o_ref[...] = jnp.zeros_like(o_ref)

    o_ref[...] += jnp.sum(x_ref[...], axis=1, keepdims=True) * inv_hw


@jax.jit
def global_avg_pool(x):
    """nn.AdaptiveAvgPool2d(1): [N,H,W,C] -> [N,1,1,C], tiled over H*W."""
    N, H, W, C = x.shape
    HW = H * W
    Cp = _round_up(C, 128)
    ts = 512 if HW > 512 else _round_up(max(HW, 8), 8)
    HWp = _round_up(HW, ts)
    xr = x.reshape(N, HW, C)
    if (HWp, Cp) != (HW, C):
        xr = jnp.pad(xr, ((0, 0), (0, HWp - HW), (0, Cp - C)))
    out = pl.pallas_call(
        functools.partial(_gap_kernel, inv_hw=1.0 / HW),
        out_shape=jax.ShapeDtypeStruct((N, 1, Cp), jnp.float32),
        grid_spec=pltpu.PrefetchScalarGridSpec(
            num_scalar_prefetch=0,
            grid=(N, HWp // ts),
            in_specs=[pl.BlockSpec((1, ts, Cp), lambda n, s: (n, s, 0))],
            out_specs=pl.BlockSpec((1, 1, Cp), lambda n, s: (n, 0, 0)),
        ),
        compiler_params=pltpu.CompilerParams(
            dimension_semantics=("parallel", "arbitrary")),
    )(xr)
    return out[:, :, :C].reshape(N, 1, 1, C)


# ------------------------------ conv / resize -------------------------------

def conv2d(x, w, scale=None, bias=None, *, relu=False, stride=1, padding=0,
           dilation=1, residual=None):
    """PyTorch Conv2d (NHWC activations, OIHW weights) + folded BN + opt
    residual add + opt ReLU, all fused into one Pallas matmul epilogue."""
    N, H, W, C = x.shape
    O, _, kh, kw = w.shape
    Hout = (H + 2 * padding - dilation * (kh - 1) - 1) // stride + 1
    Wout = (W + 2 * padding - dilation * (kw - 1) - 1) // stride + 1

    if kh == 1 and kw == 1 and stride == 1 and padding == 0:
        col = x.reshape(N * H * W, C)
    else:
        # TODO(synk): im2col is still materialized in HBM; folding the kh*kw
        # tap loop into the matmul grid (shifted activation windows) would cut
        # HBM traffic further for the dilated 3x3 convs.
        xp = jnp.pad(x, ((0, 0), (padding, padding), (padding, padding), (0, 0)))
        cols = []
        for i in range(kh):
            for j in range(kw):
                hi, wi = i * dilation, j * dilation
                patch = lax.slice(
                    xp, (0, hi, wi, 0),
                    (N, hi + (Hout - 1) * stride + 1,
                     wi + (Wout - 1) * stride + 1, C),
                    (1, stride, stride, 1))
                cols.append(patch)
        col = jnp.concatenate(cols, axis=-1).reshape(
            N * Hout * Wout, C * kh * kw)

    # weight [O, I, kh, kw] -> [kh*kw*I, O] to match col's (tap, channel) order
    wmat = jnp.transpose(w, (2, 3, 1, 0)).reshape(kh * kw * C, O)
    if scale is None:
        scale = jnp.ones((O,), jnp.float32)
    if bias is None:
        bias = jnp.zeros((O,), jnp.float32)
    if residual is not None:
        residual = residual.reshape(N * Hout * Wout, O)
    y = matmul_affine(col, wmat, scale, bias, residual, relu=relu)
    return y.reshape(N, Hout, Wout, O)


def max_pool_3x3_s2_p1(x):
    # TODO(synk): nn.MaxPool2d(3,2,1) via lax.reduce_window (plain-JAX glue).
    return lax.reduce_window(
        x, -jnp.inf, lax.max, (1, 3, 3, 1), (1, 2, 2, 1),
        ((0, 0), (1, 1), (1, 1), (0, 0)))


def _lerp_axis(x, out_size, axis):
    in_size = x.shape[axis]
    if in_size == out_size:
        return x
    if in_size == 1:
        reps = [1] * x.ndim
        reps[axis] = out_size
        return jnp.tile(x, reps)
    if out_size == 1:
        src = jnp.zeros((1,), jnp.float32)
    else:
        src = jnp.arange(out_size, dtype=jnp.float32) * (
            (in_size - 1) / (out_size - 1))
    lo = jnp.clip(jnp.floor(src).astype(jnp.int32), 0, in_size - 2)
    frac = src - lo.astype(jnp.float32)
    x_lo = jnp.take(x, lo, axis=axis)
    x_hi = jnp.take(x, lo + 1, axis=axis)
    shape = [1] * x.ndim
    shape[axis] = out_size
    frac = frac.reshape(shape)
    return x_lo * (1.0 - frac) + x_hi * frac


def bilinear_upsample(x, out_h, out_w):
    """F.interpolate(mode='bilinear', align_corners=True) on NHWC tensors."""
    # TODO(synk): plain-JAX gather/lerp glue (VPU); tiny interpolation matrices
    # would be padding-dominated on the MXU.
    N, h, w, C = x.shape
    if h == 1 and w == 1:
        return jnp.broadcast_to(x, (N, out_h, out_w, C))
    x = _lerp_axis(x, out_h, axis=1)
    x = _lerp_axis(x, out_w, axis=2)
    return x


# ------------------------------ parameters ----------------------------------

class ParamGen:
    def __init__(self, key):
        self._key = key

    def next(self):
        self._key, sub = jax.random.split(self._key)
        return sub


def make_conv(pg, cout, cin, kh, kw):
    fan_in = cin * kh * kw
    return (jax.random.normal(pg.next(), (cout, cin, kh, kw), jnp.float32)
            * np.sqrt(2.0 / fan_in))


def make_bn(pg, c):
    return {
        "gamma": 1.0 + 0.1 * jax.random.normal(pg.next(), (c,), jnp.float32),
        "beta": 0.1 * jax.random.normal(pg.next(), (c,), jnp.float32),
        "mean": 0.1 * jax.random.normal(pg.next(), (c,), jnp.float32),
        "var": 1.0 + 0.5 * jax.random.uniform(pg.next(), (c,), jnp.float32),
    }


def bn_fold(bn):
    scale = bn["gamma"] / jnp.sqrt(bn["var"] + BN_EPS)
    bias = bn["beta"] - bn["mean"] * scale
    return scale, bias


def make_bottleneck(pg, inplanes, planes, stride=1, dilation=1,
                    downsample=False, ds_stride=1):
    p = {
        "conv1": make_conv(pg, planes, inplanes, 1, 1), "bn1": make_bn(pg, planes),
        "conv2": make_conv(pg, planes, planes, 3, 3),   "bn2": make_bn(pg, planes),
        "conv3": make_conv(pg, planes * 4, planes, 1, 1), "bn3": make_bn(pg, planes * 4),
        "stride": stride, "dilation": dilation,
    }
    if downsample:
        p["ds_conv"] = make_conv(pg, planes * 4, inplanes, 1, 1)
        p["ds_bn"] = make_bn(pg, planes * 4)
        p["ds_stride"] = ds_stride
    return p


def make_layer(pg, inplanes, planes, nblocks, stride=1, dilation=1):
    downsample = (stride != 1) or (inplanes != planes * 4)
    blocks = [make_bottleneck(pg, inplanes, planes, stride=stride,
                              dilation=dilation, downsample=downsample,
                              ds_stride=stride)]
    for _ in range(1, nblocks):
        blocks.append(make_bottleneck(pg, planes * 4, planes, stride=1,
                                      dilation=dilation))
    return blocks


def build_params(key):
    # TODO(synk): pretrained ResNet-50 weights replaced by deterministic He init
    # + synthetic BN running stats (no checkpoint loading allowed).
    pg = ParamGen(key)
    params = {}
    # layer0: deep stem (conv1 3->64 s2, conv2 64->64, conv3 64->128, maxpool)
    params["layer0"] = {
        "conv1": make_conv(pg, 64, 3, 3, 3), "bn1": make_bn(pg, 64),
        "conv2": make_conv(pg, 64, 64, 3, 3), "bn2": make_bn(pg, 64),
        "conv3": make_conv(pg, 128, 64, 3, 3), "bn3": make_bn(pg, 128),
    }
    # ResNet-50: (3,4,6,3) bottlenecks; layer3/4 dilated (stride 1) per the
    # module's named_modules() patch (conv2 dilation 2/4, downsample stride 1).
    params["layer1"] = make_layer(pg, 128, 64, 3, stride=1, dilation=1)
    params["layer2"] = make_layer(pg, 256, 128, 4, stride=2, dilation=1)
    params["layer3"] = make_layer(pg, 512, 256, 6, stride=1, dilation=2)
    params["layer4"] = make_layer(pg, 1024, 512, 3, stride=1, dilation=4)
    in_channels, out_channels = 2048, 256
    aspp = {"branch0_conv": make_conv(pg, out_channels, in_channels, 1, 1),
            "branch0_bn": make_bn(pg, out_channels)}
    for i, _ in enumerate(ATROUS_RATES):
        aspp[f"branch{i+1}_conv"] = make_conv(pg, out_channels, in_channels, 3, 3)
        aspp[f"branch{i+1}_bn"] = make_bn(pg, out_channels)
    aspp["pool_conv"] = make_conv(pg, out_channels, in_channels, 1, 1)
    aspp["pool_bn"] = make_bn(pg, out_channels)
    params["aspp"] = aspp
    fea_dim = out_channels * (len(ATROUS_RATES) + 2)      # 1280
    params["cls"] = {
        "conv1": make_conv(pg, out_channels, fea_dim, 1, 1),
        "bn": make_bn(pg, out_channels),
        "conv2": make_conv(pg, CLASSES, out_channels, 1, 1),
        "conv2_bias": 0.01 * jax.random.normal(pg.next(), (CLASSES,), jnp.float32),
    }
    return params


# ------------------------------- forward ------------------------------------

def bottleneck_forward(x, p):
    s1, b1 = bn_fold(p["bn1"])
    s2, b2 = bn_fold(p["bn2"])
    s3, b3 = bn_fold(p["bn3"])
    if "ds_conv" in p:
        sd, bd = bn_fold(p["ds_bn"])
        identity = conv2d(x, p["ds_conv"], sd, bd, relu=False,
                          stride=p["ds_stride"])
    else:
        identity = x
    out = conv2d(x, p["conv1"], s1, b1, relu=True)
    out = conv2d(out, p["conv2"], s2, b2, relu=True,
                 stride=p["stride"], padding=p["dilation"],
                 dilation=p["dilation"])
    # conv3 + BN + residual add + ReLU fused into one Pallas matmul epilogue.
    out = conv2d(out, p["conv3"], s3, b3, relu=True, residual=identity)
    return out


def aspp_forward(x, p):
    res = []
    s, b = bn_fold(p["branch0_bn"])
    res.append(conv2d(x, p["branch0_conv"], s, b, relu=True))
    for i, r in enumerate(ATROUS_RATES):
        s, b = bn_fold(p[f"branch{i+1}_bn"])
        res.append(conv2d(x, p[f"branch{i+1}_conv"], s, b, relu=True,
                          padding=r, dilation=r))
    pooled = global_avg_pool(x)
    s, b = bn_fold(p["pool_bn"])
    pooled = conv2d(pooled, p["pool_conv"], s, b, relu=True)
    res.append(bilinear_upsample(pooled, x.shape[1], x.shape[2]))
    return jnp.concatenate(res, axis=-1)


def cls_forward(x, p):
    s, b = bn_fold(p["bn"])
    x = conv2d(x, p["conv1"], s, b, relu=True)
    # nn.Dropout2d(p=0.1) is identity in eval mode.
    return conv2d(x, p["conv2"], None, p["conv2_bias"], relu=False)


def deeplabv3_forward(params, x, zoom_factor=ZOOM_FACTOR):
    N, C, H, W = x.shape
    assert (H - 1) % 8 == 0 and (W - 1) % 8 == 0
    h = (H - 1) // 8 * zoom_factor + 1
    w = (W - 1) // 8 * zoom_factor + 1

    x = jnp.transpose(x, (0, 2, 3, 1))            # NCHW -> NHWC (channels-last)

    p0 = params["layer0"]
    s, b = bn_fold(p0["bn1"])
    x = conv2d(x, p0["conv1"], s, b, relu=True, stride=2, padding=1)
    s, b = bn_fold(p0["bn2"])
    x = conv2d(x, p0["conv2"], s, b, relu=True, padding=1)
    s, b = bn_fold(p0["bn3"])
    x = conv2d(x, p0["conv3"], s, b, relu=True, padding=1)
    x = max_pool_3x3_s2_p1(x)

    for blk in params["layer1"]:
        x = bottleneck_forward(x, blk)
    for blk in params["layer2"]:
        x = bottleneck_forward(x, blk)
    for blk in params["layer3"]:
        x = bottleneck_forward(x, blk)
    x_tmp = x  # only used by the aux (training) branch
    for blk in params["layer4"]:
        x = bottleneck_forward(x, blk)

    x = aspp_forward(x, params["aspp"])
    x = cls_forward(x, params["cls"])
    if zoom_factor != 1:
        x = bilinear_upsample(x, h, w)
    # TODO(synk): training branch (aux head, CrossEntropyLoss, argmax outputs)
    # not implemented; this reproduces the eval forward (indicate=0).
    del x_tmp
    return jnp.transpose(x, (0, 3, 1, 2))          # NHWC -> NCHW


if __name__ == "__main__":
    key = jax.random.PRNGKey(0)
    pkey, xkey = jax.random.split(key)
    params = build_params(pkey)
    # (H-1) % 8 == 0 and (W-1) % 8 == 0 required by the module; RGB input, NCHW.
    x = jax.random.normal(xkey, (2, 3, 17, 17), jnp.float32)
    out = deeplabv3_forward(params, x)
    out = jax.block_until_ready(out)
    assert out.shape == (2, CLASSES, 17, 17), out.shape
    assert bool(jnp.all(jnp.isfinite(out)))
    print("KERNEL_OK")
</pallas_src>

<mosaic_0001>
module attributes {stable_mosaic.version = 11 : i64} {
  func.func @_mm_affine_kernel(%arg0: i32, %arg1: i32, %arg2: i32, %arg3: memref<176x128xbf16, #tpu.memory_space<vmem>>, %arg4: memref<128x128xbf16, #tpu.memory_space<vmem>>, %arg5: memref<1x128xf32, #tpu.memory_space<vmem>>, %arg6: memref<1x128xf32, #tpu.memory_space<vmem>>, %arg7: memref<176x128xf32, #tpu.memory_space<vmem>>) attributes {dimension_semantics = [#tpu.dimension_semantics<parallel>, #tpu.dimension_semantics<parallel>, #tpu.dimension_semantics<arbitrary>], iteration_bounds = array<i64: 1, 1, 1>, scalar_prefetch = 0 : i64, scratch_operands = 0 : i64, tpu.core_type = #tpu.core_type<tc>, window_params = [{transform_indices = @transform_0, window_bounds = array<i64: 176, 128>}, {transform_indices = @transform_1, window_bounds = array<i64: 128, 128>}, {transform_indices = @transform_2, window_bounds = array<i64: 1, 128>}, {transform_indices = @transform_3, window_bounds = array<i64: 1, 128>}, {transform_indices = @transform_4, window_bounds = array<i64: 176, 128>}]} {
    %c0_i32 = arith.constant 0 : i32
    %0 = arith.cmpi eq, %arg2, %c0_i32 : i32
    %1 = arith.extui %0 : i1 to i32
    %c0_i32_0 = arith.constant 0 : i32
    %2 = arith.cmpi ne, %1, %c0_i32_0 : i32
    scf.if %2 {
      %cst_10 = arith.constant 0.000000e+00 : f32
      %12 = vector.broadcast %cst_10 : f32 to vector<176x128xf32>
      %c0_11 = arith.constant 0 : index
      %c0_12 = arith.constant 0 : index
      %13 = vector.load %arg7[%c0_11, %c0_12] : memref<176x128xf32, #tpu.memory_space<vmem>>, vector<176x128xf32>
      tpu.vector_store %arg7[%c0_11, %c0_12], %12 {strides = array<i32>} : memref<176x128xf32, #tpu.memory_space<vmem>>, vector<176x128xf32>,
    } else {
    }
    %c0 = arith.constant 0 : index
    %c0_1 = arith.constant 0 : index
    %3 = vector.load %arg7[%c0, %c0_1] : memref<176x128xf32, #tpu.memory_space<vmem>>, vector<176x128xf32>
    %c0_2 = arith.constant 0 : index
    %c0_3 = arith.constant 0 : index
    %4 = vector.load %arg3[%c0_2, %c0_3] : memref<176x128xbf16, #tpu.memory_space<vmem>>, vector<176x128xbf16>
    %c0_4 = arith.constant 0 : index
    %c0_5 = arith.constant 0 : index
    %5 = vector.load %arg4[%c0_4, %c0_5] : memref<128x128xbf16, #tpu.memory_space<vmem>>, vector<128x128xbf16>
    %cst = arith.constant dense<0.000000e+00> : vector<176x128xf32>
    %6 = tpu.matmul %4, %5, %cst {dimension_numbers = #tpu.dot_dimension_numbers<[1], [0], [0], [1], [0, 0, 1, 1], [], []>} : vector<176x128xbf16>, vector<128x128xbf16>, vector<176x128xf32> -> vector<176x128xf32>
    %7 = arith.addf %3, %6 : vector<176x128xf32>
    %c0_6 = arith.constant 0 : index
    %c0_7 = arith.constant 0 : index
    %8 = vector.load %arg7[%c0_6, %c0_7] : memref<176x128xf32, #tpu.memory_space<vmem>>, vector<176x128xf32>
    tpu.vector_store %arg7[%c0_6, %c0_7], %7 {strides = array<i32>} : memref<176x128xf32, #tpu.memory_space<vmem>>, vector<176x128xf32>,
    %c0_i32_8 = arith.constant 0 : i32
    %9 = arith.cmpi eq, %arg2, %c0_i32_8 : i32
    %10 = arith.extui %9 : i1 to i32
    %c0_i32_9 = arith.constant 0 : i32
    %11 = arith.cmpi ne, %10, %c0_i32_9 : i32
    scf.if %11 {
      %c0_10 = arith.constant 0 : index
      %c0_11 = arith.constant 0 : index
      %12 = vector.load %arg7[%c0_10, %c0_11] : memref<176x128xf32, #tpu.memory_space<vmem>>, vector<176x128xf32>
      %c0_12 = arith.constant 0 : index
      %c0_13 = arith.constant 0 : index
      %13 = vector.load %arg5[%c0_12, %c0_13] : memref<1x128xf32, #tpu.memory_space<vmem>>, vector<1x128xf32>
      %14 = vector.broadcast %13 : vector<1x128xf32> to vector<176x128xf32>
      %15 = arith.mulf %12, %14 : vector<176x128xf32>
      %c0_14 = arith.constant 0 : index
      %c0_15 = arith.constant 0 : index
      %16 = vector.load %arg6[%c0_14, %c0_15] : memref<1x128xf32, #tpu.memory_space<vmem>>, vector<1x128xf32>
      %17 = vector.broadcast %16 : vector<1x128xf32> to vector<176x128xf32>
      %18 = arith.addf %15, %17 : vector<176x128xf32>
      %cst_16 = arith.constant 0.000000e+00 : f32
      %19 = vector.broadcast %cst_16 : f32 to vector<176x128xf32>
      %20 = arith.maximumf %18, %19 : vector<176x128xf32>
      %c0_17 = arith.constant 0 : index
      %c0_18 = arith.constant 0 : index
      %21 = vector.load %arg7[%c0_17, %c0_18] : memref<176x128xf32, #tpu.memory_space<vmem>>, vector<176x128xf32>
      tpu.vector_store %arg7[%c0_17, %c0_18], %20 {strides = array<i32>} : memref<176x128xf32, #tpu.memory_space<vmem>>, vector<176x128xf32>,
    } else {
    }
    return
  }
  func.func @transform_0(%arg0: i32, %arg1: i32, %arg2: i32) -> (i32, i32) {
    %c0_i32 = arith.constant 0 : i32
    return %arg0, %arg2 : i32, i32
  }
  func.func @transform_1(%arg0: i32, %arg1: i32, %arg2: i32) -> (i32, i32) {
    %c0_i32 = arith.constant 0 : i32
    return %arg2, %arg1 : i32, i32
  }
  func.func @transform_2(%arg0: i32, %arg1: i32, %arg2: i32) -> (i32, i32) {
    %c0_i32 = arith.constant 0 : i32
    %c0_i32_0 = arith.constant 0 : i32
    return %c0_i32, %arg1 : i32, i32
  }
  func.func @transform_3(%arg0: i32, %arg1: i32, %arg2: i32) -> (i32, i32) {
    %c0_i32 = arith.constant 0 : i32
    %c0_i32_0 = arith.constant 0 : i32
    return %c0_i32, %arg1 : i32, i32
  }
  func.func @transform_4(%arg0: i32, %arg1: i32, %arg2: i32) -> (i32, i32) {
    %c0_i32 = arith.constant 0 : i32
    return %arg0, %arg1 : i32, i32
  }
}

</mosaic_0001>

<llo_original>
// kernel: matmul_affine.1
$region0: #{matmul_affine.1}
  #allocation0 [shape = 'u32[]', space=smem, size = 0x4, offset = 0x4, fixed_abs, tag = 'smem constant byte address 0x4 - core index']
  #allocation1 [shape = 'u32[144,128]{1,0:T(1,128)}', space=vmem, size = 0x12000, scoped, tag = 'internal scratch']
  %s0 = inlined_call_operand.vmem [shape: bf16[176,128], index: 0, kind: input, shape index: {}]
  %s1 = inlined_call_operand.vmem [shape: bf16[128,128], index: 1, kind: input, shape index: {}]
  %s2 = inlined_call_operand.vmem [shape: f32[1,128], index: 2, kind: input, shape index: {}]
  %s3 = inlined_call_operand.vmem [shape: f32[1,128], index: 3, kind: input, shape index: {}]
  %s4 = inlined_call_operand.vmem [shape: f32[176,128], index: 4, kind: output, shape index: {}]
  %s5 = sld [smem:[#allocation0]]
  $region34: #{matmul_affine.1} parent=0
    _
  %s7 = ssub.s32 1, %s5
  %s8 = scalar_select 0, %s7, %s5
  // Predicated region
  $region2: #{matmul_affine.1} parent=0 // pred_check
    _
  $region3: #{matmul_affine.1} parent=0 // pred_check_branch
    %10 = sbr.rel (0) target = $region5
  $region4: #{matmul_affine.1} parent=0 // pred_region
    _
  $region5: #{matmul_affine.1} parent=0 // pred_fallthru
    _
  // Predicated region
  $region6: #{matmul_affine.1} parent=0 // pred_check
    _
  $region7: #{matmul_affine.1} parent=0 // pred_check_branch
    %12 = sbr.rel (0) target = $region9
  $region8: #{matmul_affine.1} parent=0 // pred_region
    _
  $region9: #{matmul_affine.1} parent=0 // pred_fallthru
    _
  // Predicated region
  $region10: #{matmul_affine.1} parent=0 // pred_check
    _
  $region11: #{matmul_affine.1} parent=0 // pred_check_branch
    %14 = sbr.rel (0) target = $region13
  $region12: #{matmul_affine.1} parent=0 // pred_region
    _
  $region13: #{matmul_affine.1} parent=0 // pred_fallthru
    _
  // Predicated region
  $region14: #{matmul_affine.1} parent=0 // pred_check
    _
  $region15: #{matmul_affine.1} parent=0 // pred_check_branch
    %16 = sbr.rel (0) target = $region17
  $region16: #{matmul_affine.1} parent=0 // pred_region
    _
  $region17: #{matmul_affine.1} parent=0 // pred_fallthru
    _
  %p18 = scmp.eq.s32.totalorder 0, 0
  // Predicated region
  $region18: #{matmul_affine.1} parent=0 // pred_check
    %p19 = pneg %p18
  $region19: #{matmul_affine.1} parent=0 // pred_check_branch
    %21 = sbr.rel (%p19) target = $region21
  $region20: #{matmul_affine.1} parent=0 // pred_region
    %22 = vst [vmem:[%s4] sm:$0xff] 0.0
    %23 = vst [vmem:[%s4 + $0x8] sm:$0xff] 0.0
    %24 = vst [vmem:[%s4 + $0x10] sm:$0xff] 0.0
    %25 = vst [vmem:[%s4 + $0x18] sm:$0xff] 0.0
    %26 = vst [vmem:[%s4 + $0x20] sm:$0xff] 0.0
    %27 = vst [vmem:[%s4 + $0x28] sm:$0xff] 0.0
    %28 = vst [vmem:[%s4 + $0x30] sm:$0xff] 0.0
    %29 = vst [vmem:[%s4 + $0x38] sm:$0xff] 0.0
    %30 = vst [vmem:[%s4 + $0x40] sm:$0xff] 0.0
    %31 = vst [vmem:[%s4 + $0x48] sm:$0xff] 0.0
    %32 = vst [vmem:[%s4 + $0x50] sm:$0xff] 0.0
    %33 = vst [vmem:[%s4 + $0x58] sm:$0xff] 0.0
    %34 = vst [vmem:[%s4 + $0x60] sm:$0xff] 0.0
    %35 = vst [vmem:[%s4 + $0x68] sm:$0xff] 0.0
    %36 = vst [vmem:[%s4 + $0x70] sm:$0xff] 0.0
    %37 = vst [vmem:[%s4 + $0x78] sm:$0xff] 0.0
    %38 = vst [vmem:[%s4 + $0x80] sm:$0xff] 0.0
    %39 = vst [vmem:[%s4 + $0x88] sm:$0xff] 0.0
    %40 = vst [vmem:[%s4 + $0x90] sm:$0xff] 0.0
    %41 = vst [vmem:[%s4 + $0x98] sm:$0xff] 0.0
    %42 = vst [vmem:[%s4 + $0xa0] sm:$0xff] 0.0
    %43 = vst [vmem:[%s4 + $0xa8] sm:$0xff] 0.0
  $region21: #{matmul_affine.1} parent=0 // pred_fallthru
    _
  %v44 = vld [vmem:[%s4] sm:$0xff]
  %v45 = vld [vmem:[%s4 + $0x8] sm:$0xff]
  %v46 = vld [vmem:[%s4 + $0x10] sm:$0xff]
  %v47 = vld [vmem:[%s4 + $0x18] sm:$0xff]
  %v48 = vld [vmem:[%s4 + $0x20] sm:$0xff]
  %v49 = vld [vmem:[%s4 + $0x28] sm:$0xff]
  %v50 = vld [vmem:[%s4 + $0x30] sm:$0xff]
  %v51 = vld [vmem:[%s4 + $0x38] sm:$0xff]
  %v52 = vld [vmem:[%s4 + $0x40] sm:$0xff]
  %v53 = vld [vmem:[%s4 + $0x48] sm:$0xff]
  %v54 = vld [vmem:[%s4 + $0x50] sm:$0xff]
  %v55 = vld [vmem:[%s4 + $0x58] sm:$0xff]
  %v56 = vld [vmem:[%s4 + $0x60] sm:$0xff]
  %v57 = vld [vmem:[%s4 + $0x68] sm:$0xff]
  %v58 = vld [vmem:[%s4 + $0x70] sm:$0xff]
  %v59 = vld [vmem:[%s4 + $0x78] sm:$0xff]
  %v60 = vld [vmem:[%s4 + $0x80] sm:$0xff]
  %v61 = vld [vmem:[%s4 + $0x88] sm:$0xff]
  %v62 = vld [vmem:[%s4 + $0x90] sm:$0xff]
  %v63 = vld [vmem:[%s4 + $0x98] sm:$0xff]
  %v64 = vld [vmem:[%s4 + $0xa0] sm:$0xff]
  %v65 = vld [vmem:[%s4 + $0xa8] sm:$0xff]
  %v66 = vld [vmem:[%s0] sm:$0xf]
  %v67 = vld [vmem:[%s0 + $0x4] sm:$0xf]
  %v68 = vld [vmem:[%s0 + $0x8] sm:$0xf]
  %v69 = vld [vmem:[%s0 + $0xc] sm:$0xf]
  %v70 = vld [vmem:[%s0 + $0x10] sm:$0xf]
  %v71 = vld [vmem:[%s0 + $0x14] sm:$0xf]
  %v72 = vld [vmem:[%s0 + $0x18] sm:$0xf]
  %v73 = vld [vmem:[%s0 + $0x1c] sm:$0xf]
  %v74 = vld [vmem:[%s0 + $0x20] sm:$0xf]
  %v75 = vld [vmem:[%s0 + $0x24] sm:$0xf]
  %v76 = vld [vmem:[%s0 + $0x28] sm:$0xf]
  %v77 = vld [vmem:[%s0 + $0x2c] sm:$0xf]
  %v78 = vld [vmem:[%s0 + $0x30] sm:$0xf]
  %v79 = vld [vmem:[%s0 + $0x34] sm:$0xf]
  %v80 = vld [vmem:[%s0 + $0x38] sm:$0xf]
  %v81 = vld [vmem:[%s0 + $0x3c] sm:$0xf]
  %v82 = vld [vmem:[%s0 + $0x40] sm:$0xf]
  %v83 = vld [vmem:[%s0 + $0x44] sm:$0xf]
  %v84 = vld [vmem:[%s0 + $0x48] sm:$0xf]
  %v85 = vld [vmem:[%s0 + $0x4c] sm:$0xf]
  %v86 = vld [vmem:[%s0 + $0x50] sm:$0xf]
  %v87 = vld [vmem:[%s0 + $0x54] sm:$0xf]
  %v88 = vld [vmem:[%s1] sm:$0xf]
  %v89 = vld [vmem:[%s1 + $0x4] sm:$0xf]
  %v90 = vld [vmem:[%s1 + $0x8] sm:$0xf]
  %v91 = vld [vmem:[%s1 + $0xc] sm:$0xf]
  %v92 = vld [vmem:[%s1 + $0x10] sm:$0xf]
  %v93 = vld [vmem:[%s1 + $0x14] sm:$0xf]
  %v94 = vld [vmem:[%s1 + $0x18] sm:$0xf]
  %v95 = vld [vmem:[%s1 + $0x1c] sm:$0xf]
  %v96 = vld [vmem:[%s1 + $0x20] sm:$0xf]
  %v97 = vld [vmem:[%s1 + $0x24] sm:$0xf]
  %v98 = vld [vmem:[%s1 + $0x28] sm:$0xf]
  %v99 = vld [vmem:[%s1 + $0x2c] sm:$0xf]
  %v100 = vld [vmem:[%s1 + $0x30] sm:$0xf]
  %v101 = vld [vmem:[%s1 + $0x34] sm:$0xf]
  %v102 = vld [vmem:[%s1 + $0x38] sm:$0xf]
  %v103 = vld [vmem:[%s1 + $0x3c] sm:$0xf]
  %v126 = vunpack.c.l.b16 %v66
  %v127 = vunpack.c.l.b16 %v67
  %v128 = vunpack.c.l.b16 %v68
  %v129 = vunpack.c.l.b16 %v69
  %v130 = vunpack.c.l.b16 %v70
  %v131 = vunpack.c.l.b16 %v71
  %v132 = vunpack.c.l.b16 %v72
  %v133 = vunpack.c.l.b16 %v73
  %v134 = vunpack.c.l.b16 %v74
  %v135 = vunpack.c.l.b16 %v75
  %v136 = vunpack.c.l.b16 %v76
  %v137 = vunpack.c.l.b16 %v77
  %v138 = vunpack.c.l.b16 %v78
  %v139 = vunpack.c.l.b16 %v79
  %v140 = vunpack.c.l.b16 %v80
  %v141 = vunpack.c.l.b16 %v81
  %v142 = vunpack.c.l.b16 %v82
  %v143 = vunpack.c.l.b16 %v83
  %v144 = vunpack.c.l.b16 %v84
  %v145 = vunpack.c.l.b16 %v85
  %v146 = vunpack.c.l.b16 %v86
  %v147 = vunpack.c.l.b16 %v87
  %v148 = vpack.c.b16 %v127, %v126
  %v149 = vpack.c.b16 %v129, %v128
  %v150 = vpack.c.b16 %v131, %v130
  %v151 = vpack.c.b16 %v133, %v132
  %v152 = vpack.c.b16 %v135, %v134
  %v153 = vpack.c.b16 %v137, %v136
  %v154 = vpack.c.b16 %v139, %v138
  %v155 = vpack.c.b16 %v141, %v140
  %v156 = vpack.c.b16 %v143, %v142
  %v157 = vpack.c.b16 %v145, %v144
  %v158 = vpack.c.b16 %v147, %v146
  %v186 = vunpack.c.l.b16 %v88
  %v187 = vunpack.c.l.b16 %v89
  %v188 = vunpack.c.l.b16 %v90
  %v189 = vunpack.c.l.b16 %v91
  %v190 = vunpack.c.l.b16 %v92
  %v191 = vunpack.c.l.b16 %v93
  %v192 = vunpack.c.l.b16 %v94
  %v193 = vunpack.c.l.b16 %v95
  %v194 = vunpack.c.l.b16 %v96
  %v195 = vunpack.c.l.b16 %v97
  %v196 = vunpack.c.l.b16 %v98
  %v197 = vunpack.c.l.b16 %v99
  %v198 = vunpack.c.l.b16 %v100
  %v199 = vunpack.c.l.b16 %v101
  %v200 = vunpack.c.l.b16 %v102
  %v201 = vunpack.c.l.b16 %v103
  %v202 = vpack.c.b16 %v187, %v186
  %v203 = vpack.c.b16 %v189, %v188
  %v204 = vpack.c.b16 %v191, %v190
  %v205 = vpack.c.b16 %v193, %v192
  %v206 = vpack.c.b16 %v195, %v194
  %v207 = vpack.c.b16 %v197, %v196
  %v208 = vpack.c.b16 %v199, %v198
  %v209 = vpack.c.b16 %v201, %v200
  %218 = vmatprep.subr.bf16.mxu0 0
  %219 = vmatpush1.bf16.msra.mxu0 %v202
  %220 = vmatprep.subr.bf16.mxu0 0
  %221 = vmatpush1.bf16.msra.mxu0 %v203
  %222 = vmatprep.subr.bf16.mxu0 0
  %223 = vmatpush1.bf16.msra.mxu0 %v204
  %224 = vmatprep.subr.bf16.mxu0 0
  %225 = vmatpush1.bf16.msra.mxu0 %v205
  %226 = vmatprep.subr.bf16.mxu0 0
  %227 = vmatpush1.bf16.msra.mxu0 %v206
  %228 = vmatprep.subr.bf16.mxu0 0
  %229 = vmatpush1.bf16.msra.mxu0 %v207
  %230 = vmatprep.subr.bf16.mxu0 0
  %231 = vmatpush1.bf16.msra.mxu0 %v208
  %232 = vmatprep.subr.bf16.mxu0 0
  %233 = vmatpush1.bf16.msra.mxu0 %v209
  %234 = vmatprep.subr.bf16.mxu0 0
  %235 = vmatpush1.bf16.msra.mxu0 0
  %236 = vmatprep.subr.bf16.mxu0 0
  %237 = vmatpush1.bf16.msra.mxu0 0
  %238 = vmatprep.subr.bf16.mxu0 0
  %239 = vmatpush1.bf16.msra.mxu0 0
  %240 = vmatprep.subr.bf16.mxu0 0
  %241 = vmatpush1.bf16.msra.mxu0 0
  %242 = vmatprep.subr.bf16.mxu0 0
  %243 = vmatpush1.bf16.msra.mxu0 0
  %244 = vmatprep.subr.bf16.mxu0 0
  %245 = vmatpush1.bf16.msra.mxu0 0
  %246 = vmatprep.subr.bf16.mxu0 0
  %247 = vmatpush1.bf16.msra.mxu0 0
  %248 = vmatprep.subr.bf16.mxu0 0
  %249 = vmatpush1.bf16.msra.mxu0 0
  %250 = vmatprep.mubr.bf16.mxu0 0
  %251 = vmatmul.mubr.bf16.gmra.mrb[0].mxu0 %v148
  %v252 = vpop.f32.mrb[0].mxu0
  %v253 = vadd.f32 0.0, %v252
  %v254 = vpop.f32.mrb[0].mxu0
  %v255 = vpop.f32.mrb[0].mxu0
  %v256 = vadd.f32 0.0, %v255
  %v257 = vpop.f32.mrb[0].mxu0
  %258 = vmatprep.mubr.bf16.mxu0 0
  %259 = vmatmul.mubr.bf16.gmra.mrb[0].mxu0 %v149
  %v260 = vpop.f32.mrb[0].mxu0
  %v261 = vadd.f32 0.0, %v260
  %v262 = vpop.f32.mrb[0].mxu0
  %v263 = vpop.f32.mrb[0].mxu0
  %v264 = vadd.f32 0.0, %v263
  %v265 = vpop.f32.mrb[0].mxu0
  %266 = vmatprep.mubr.bf16.mxu0 0
  %267 = vmatmul.mubr.bf16.gmra.mrb[0].mxu0 %v150
  %v268 = vpop.f32.mrb[0].mxu0
  %v269 = vadd.f32 0.0, %v268
  %v270 = vpop.f32.mrb[0].mxu0
  %v271 = vpop.f32.mrb[0].mxu0
  %v272 = vadd.f32 0.0, %v271
  %v273 = vpop.f32.mrb[0].mxu0
  %274 = vmatprep.mubr.bf16.mxu0 0
  %275 = vmatmul.mubr.bf16.gmra.mrb[0].mxu0 %v151
  %v276 = vpop.f32.mrb[0].mxu0
  %v277 = vadd.f32 0.0, %v276
  %v278 = vpop.f32.mrb[0].mxu0
  %v279 = vpop.f32.mrb[0].mxu0
  %v280 = vadd.f32 0.0, %v279
  %v281 = vpop.f32.mrb[0].mxu0
  %282 = vmatprep.mubr.bf16.mxu0 0
  %283 = vmatmul.mubr.bf16.gmra.mrb[0].mxu0 %v152
  %v284 = vpop.f32.mrb[0].mxu0
  %v285 = vadd.f32 0.0, %v284
  %v286 = vpop.f32.mrb[0].mxu0
  %v287 = vpop.f32.mrb[0].mxu0
  %v288 = vadd.f32 0.0, %v287
  %v289 = vpop.f32.mrb[0].mxu0
  %290 = vmatprep.mubr.bf16.mxu0 0
  %291 = vmatmul.mubr.bf16.gmra.mrb[0].mxu0 %v153
  %v292 = vpop.f32.mrb[0].mxu0
  %v293 = vadd.f32 0.0, %v292
  %v294 = vpop.f32.mrb[0].mxu0
  %v295 = vpop.f32.mrb[0].mxu0
  %v296 = vadd.f32 0.0, %v295
  %v297 = vpop.f32.mrb[0].mxu0
  %298 = vmatprep.mubr.bf16.mxu0 0
  %299 = vmatmul.mubr.bf16.gmra.mrb[0].mxu0 %v154
  %v300 = vpop.f32.mrb[0].mxu0
  %v301 = vadd.f32 0.0, %v300
  %v302 = vpop.f32.mrb[0].mxu0
  %v303 = vpop.f32.mrb[0].mxu0
  %v304 = vadd.f32 0.0, %v303
  %v305 = vpop.f32.mrb[0].mxu0
  %306 = vmatprep.mubr.bf16.mxu0 0
  %307 = vmatmul.mubr.bf16.gmra.mrb[0].mxu0 %v155
  %v308 = vpop.f32.mrb[0].mxu0
  %v309 = vadd.f32 0.0, %v308
  %v310 = vpop.f32.mrb[0].mxu0
  %v311 = vpop.f32.mrb[0].mxu0
  %v312 = vadd.f32 0.0, %v311
  %v313 = vpop.f32.mrb[0].mxu0
  %314 = vmatprep.mubr.bf16.mxu0 0
  %315 = vmatmul.mubr.bf16.gmra.mrb[0].mxu0 %v156
  %v316 = vpop.f32.mrb[0].mxu0
  %v317 = vadd.f32 0.0, %v316
  %v318 = vpop.f32.mrb[0].mxu0
  %v319 = vpop.f32.mrb[0].mxu0
  %v320 = vadd.f32 0.0, %v319
  %v321 = vpop.f32.mrb[0].mxu0
  %322 = vmatprep.mubr.bf16.mxu0 0
  %323 = vmatmul.mubr.bf16.gmra.mrb[0].mxu0 %v157
  %v324 = vpop.f32.mrb[0].mxu0
  %v325 = vadd.f32 0.0, %v324
  %v326 = vpop.f32.mrb[0].mxu0
  %v327 = vpop.f32.mrb[0].mxu0
  %v328 = vadd.f32 0.0, %v327
  %v329 = vpop.f32.mrb[0].mxu0
  %330 = vmatprep.mubr.bf16.mxu0 0
  %331 = vmatmul.mubr.bf16.gmra.mrb[0].mxu0 %v158
  %v332 = vpop.f32.mrb[0].mxu0
  %v333 = vadd.f32 0.0, %v332
  %v334 = vpop.f32.mrb[0].mxu0
  %v335 = vpop.f32.mrb[0].mxu0
  %v336 = vadd.f32 0.0, %v335
  %v337 = vpop.f32.mrb[0].mxu0
  %338 = vdwg.mxu0
  %v339 = vadd.f32 %v44, %v253
  %v340 = vadd.f32 %v45, %v256
  %v341 = vadd.f32 %v46, %v261
  %v342 = vadd.f32 %v47, %v264
  %v343 = vadd.f32 %v48, %v269
  %v344 = vadd.f32 %v49, %v272
  %v345 = vadd.f32 %v50, %v277
  %v346 = vadd.f32 %v51, %v280
  %v347 = vadd.f32 %v52, %v285
  %v348 = vadd.f32 %v53, %v288
  %v349 = vadd.f32 %v54, %v293
  %v350 = vadd.f32 %v55, %v296
  %v351 = vadd.f32 %v56, %v301
  %v352 = vadd.f32 %v57, %v304
  %v353 = vadd.f32 %v58, %v309
  %v354 = vadd.f32 %v59, %v312
  %v355 = vadd.f32 %v60, %v317
  %v356 = vadd.f32 %v61, %v320
  %v357 = vadd.f32 %v62, %v325
  %v358 = vadd.f32 %v63, %v328
  %v359 = vadd.f32 %v64, %v333
  %v360 = vadd.f32 %v65, %v336
  %361 = vst [vmem:[%s4] sm:$0xff] %v339
  %362 = vst [vmem:[%s4 + $0x8] sm:$0xff] %v340
  %363 = vst [vmem:[%s4 + $0x10] sm:$0xff] %v341
  %364 = vst [vmem:[%s4 + $0x18] sm:$0xff] %v342
  %365 = vst [vmem:[%s4 + $0x20] sm:$0xff] %v343
  %366 = vst [vmem:[%s4 + $0x28] sm:$0xff] %v344
  %367 = vst [vmem:[%s4 + $0x30] sm:$0xff] %v345
  %368 = vst [vmem:[%s4 + $0x38] sm:$0xff] %v346
  %369 = vst [vmem:[%s4 + $0x40] sm:$0xff] %v347
  %370 = vst [vmem:[%s4 + $0x48] sm:$0xff] %v348
  %371 = vst [vmem:[%s4 + $0x50] sm:$0xff] %v349
  %372 = vst [vmem:[%s4 + $0x58] sm:$0xff] %v350
  %373 = vst [vmem:[%s4 + $0x60] sm:$0xff] %v351
  %374 = vst [vmem:[%s4 + $0x68] sm:$0xff] %v352
  %375 = vst [vmem:[%s4 + $0x70] sm:$0xff] %v353
  %376 = vst [vmem:[%s4 + $0x78] sm:$0xff] %v354
  %377 = vst [vmem:[%s4 + $0x80] sm:$0xff] %v355
  %378 = vst [vmem:[%s4 + $0x88] sm:$0xff] %v356
  %379 = vst [vmem:[%s4 + $0x90] sm:$0xff] %v357
  %380 = vst [vmem:[%s4 + $0x98] sm:$0xff] %v358
  %381 = vst [vmem:[%s4 + $0xa0] sm:$0xff] %v359
  %382 = vst [vmem:[%s4 + $0xa8] sm:$0xff] %v360
  // Predicated region
  $region22: #{matmul_affine.1} parent=0 // pred_check
    %p383 = pneg %p18
  $region23: #{matmul_affine.1} parent=0 // pred_check_branch
    %385 = sbr.rel (%p383) target = $region25
  $region24: #{matmul_affine.1} parent=0 // pred_region
    %v386 = vld [vmem:[%s4] sm:$0xff]
    %v387 = vld [vmem:[%s4 + $0x8] sm:$0xff]
    %v388 = vld [vmem:[%s4 + $0x10] sm:$0xff]
    %v389 = vld [vmem:[%s4 + $0x18] sm:$0xff]
    %v390 = vld [vmem:[%s4 + $0x20] sm:$0xff]
    %v391 = vld [vmem:[%s4 + $0x28] sm:$0xff]
    %v392 = vld [vmem:[%s4 + $0x30] sm:$0xff]
    %v393 = vld [vmem:[%s4 + $0x38] sm:$0xff]
    %v394 = vld [vmem:[%s4 + $0x40] sm:$0xff]
    %v395 = vld [vmem:[%s4 + $0x48] sm:$0xff]
    %v396 = vld [vmem:[%s4 + $0x50] sm:$0xff]
    %v397 = vld [vmem:[%s4 + $0x58] sm:$0xff]
    %v398 = vld [vmem:[%s4 + $0x60] sm:$0xff]
    %v399 = vld [vmem:[%s4 + $0x68] sm:$0xff]
    %v400 = vld [vmem:[%s4 + $0x70] sm:$0xff]
    %v401 = vld [vmem:[%s4 + $0x78] sm:$0xff]
    %v402 = vld [vmem:[%s4 + $0x80] sm:$0xff]
    %v403 = vld [vmem:[%s4 + $0x88] sm:$0xff]
    %v404 = vld [vmem:[%s4 + $0x90] sm:$0xff]
    %v405 = vld [vmem:[%s4 + $0x98] sm:$0xff]
    %v406 = vld [vmem:[%s4 + $0xa0] sm:$0xff]
    %v407 = vld [vmem:[%s4 + $0xa8] sm:$0xff]
    %v408 = vld [vmem:[%s2] sm:$0x1]
    %v410 = vlaneseq
    %v411 = vshrl.u32 %v410, 7
    %v412 = vsub.s32 0, %v411
    %v413 = vrot.slane %v408, %v412
    %v415 = vmul.f32 %v386, %v413
    %v416 = vmul.f32 %v387, %v413
    %v417 = vmul.f32 %v388, %v413
    %v418 = vmul.f32 %v389, %v413
    %v419 = vmul.f32 %v390, %v413
    %v420 = vmul.f32 %v391, %v413
    %v421 = vmul.f32 %v392, %v413
    %v422 = vmul.f32 %v393, %v413
    %v423 = vmul.f32 %v394, %v413
    %v424 = vmul.f32 %v395, %v413
    %v425 = vmul.f32 %v396, %v413
    %v426 = vmul.f32 %v397, %v413
    %v427 = vmul.f32 %v398, %v413
    %v428 = vmul.f32 %v399, %v413
    %v429 = vmul.f32 %v400, %v413
    %v430 = vmul.f32 %v401, %v413
    %v431 = vmul.f32 %v402, %v413
    %v432 = vmul.f32 %v403, %v413
    %v433 = vmul.f32 %v404, %v413
    %v434 = vmul.f32 %v405, %v413
    %v435 = vmul.f32 %v406, %v413
    %v436 = vmul.f32 %v407, %v413
    %v437 = vld [vmem:[%s3] sm:$0x1]
    %v439 = vlaneseq
    %v440 = vshrl.u32 %v439, 7
    %v441 = vsub.s32 0, %v440
    %v442 = vrot.slane %v437, %v441
    %v444 = vadd.f32 %v415, %v442
    %v445 = vadd.f32 %v416, %v442
    %v446 = vadd.f32 %v417, %v442
    %v447 = vadd.f32 %v418, %v442
    %v448 = vadd.f32 %v419, %v442
    %v449 = vadd.f32 %v420, %v442
    %v450 = vadd.f32 %v421, %v442
    %v451 = vadd.f32 %v422, %v442
    %v452 = vadd.f32 %v423, %v442
    %v453 = vadd.f32 %v424, %v442
    %v454 = vadd.f32 %v425, %v442
    %v455 = vadd.f32 %v426, %v442
    %v456 = vadd.f32 %v427, %v442
    %v457 = vadd.f32 %v428, %v442
    %v458 = vadd.f32 %v429, %v442
    %v459 = vadd.f32 %v430, %v442
    %v460 = vadd.f32 %v431, %v442
    %v461 = vadd.f32 %v432, %v442
    %v462 = vadd.f32 %v433, %v442
    %v463 = vadd.f32 %v434, %v442
    %v464 = vadd.f32 %v435, %v442
    %v465 = vadd.f32 %v436, %v442
    %v466 = vmax.f32 %v444, 0.0
    %v467 = vmax.f32 %v445, 0.0
    %v468 = vmax.f32 %v446, 0.0
    %v469 = vmax.f32 %v447, 0.0
    %v470 = vmax.f32 %v448, 0.0
    %v471 = vmax.f32 %v449, 0.0
    %v472 = vmax.f32 %v450, 0.0
    %v473 = vmax.f32 %v451, 0.0
    %v474 = vmax.f32 %v452, 0.0
    %v475 = vmax.f32 %v453, 0.0
    %v476 = vmax.f32 %v454, 0.0
    %v477 = vmax.f32 %v455, 0.0
    %v478 = vmax.f32 %v456, 0.0
    %v479 = vmax.f32 %v457, 0.0
    %v480 = vmax.f32 %v458, 0.0
    %v481 = vmax.f32 %v459, 0.0
    %v482 = vmax.f32 %v460, 0.0
    %v483 = vmax.f32 %v461, 0.0
    %v484 = vmax.f32 %v462, 0.0
    %v485 = vmax.f32 %v463, 0.0
    %v486 = vmax.f32 %v464, 0.0
    %v487 = vmax.f32 %v465, 0.0
    %488 = vst [vmem:[%s4] sm:$0xff] %v466
    %489 = vst [vmem:[%s4 + $0x8] sm:$0xff] %v467
    %490 = vst [vmem:[%s4 + $0x10] sm:$0xff] %v468
    %491 = vst [vmem:[%s4 + $0x18] sm:$0xff] %v469
    %492 = vst [vmem:[%s4 + $0x20] sm:$0xff] %v470
    %493 = vst [vmem:[%s4 + $0x28] sm:$0xff] %v471
    %494 = vst [vmem:[%s4 + $0x30] sm:$0xff] %v472
    %495 = vst [vmem:[%s4 + $0x38] sm:$0xff] %v473
    %496 = vst [vmem:[%s4 + $0x40] sm:$0xff] %v474
    %497 = vst [vmem:[%s4 + $0x48] sm:$0xff] %v475
    %498 = vst [vmem:[%s4 + $0x50] sm:$0xff] %v476
    %499 = vst [vmem:[%s4 + $0x58] sm:$0xff] %v477
    %500 = vst [vmem:[%s4 + $0x60] sm:$0xff] %v478
    %501 = vst [vmem:[%s4 + $0x68] sm:$0xff] %v479
    %502 = vst [vmem:[%s4 + $0x70] sm:$0xff] %v480
    %503 = vst [vmem:[%s4 + $0x78] sm:$0xff] %v481
    %504 = vst [vmem:[%s4 + $0x80] sm:$0xff] %v482
    %505 = vst [vmem:[%s4 + $0x88] sm:$0xff] %v483
    %506 = vst [vmem:[%s4 + $0x90] sm:$0xff] %v484
    %507 = vst [vmem:[%s4 + $0x98] sm:$0xff] %v485
    %508 = vst [vmem:[%s4 + $0xa0] sm:$0xff] %v486
    %509 = vst [vmem:[%s4 + $0xa8] sm:$0xff] %v487
  $region25: #{matmul_affine.1} parent=0 // pred_fallthru
    _
  // Predicated region
  $region26: #{matmul_affine.1} parent=0 // pred_check
    _
  $region27: #{matmul_affine.1} parent=0 // pred_check_branch
    %511 = sbr.rel (0) target = $region29
  $region28: #{matmul_affine.1} parent=0 // pred_region
    _
  $region29: #{matmul_affine.1} parent=0 // pred_fallthru
    _
  // Predicated region
  $region30: #{matmul_affine.1} parent=0 // pred_check
    _
  $region31: #{matmul_affine.1} parent=0 // pred_check_branch
    %513 = sbr.rel (0) target = $region33
  $region32: #{matmul_affine.1} parent=0 // pred_region
    _
  $region33: #{matmul_affine.1} parent=0 // pred_fallthru
    _

</llo_original>
